<compile_context>
chip_gen: v6e
topology: v6e:2x2x1
jax: 0.10.0
libtpu: 0.0.40
codegen_flags: <defaults>
</compile_context>

<pallas_src>
import jax
import jax.numpy as jnp
from jax import lax
from jax.experimental import pallas as pl
from jax.experimental.pallas import tpu as pltpu


def _round_up(n, m):
    return ((n + m - 1) // m) * m


def _predictor_kernel(xT_ref, w1T_ref, b1_ref, w2T_ref, b2_ref, oT_ref):
    """Fused MLP, transposed (lane-dense) layout.

    xT_ref : (dim_h, tm)    column tile of x^T (batch maps to lanes)
    w1T_ref: (hidden, dim_h)   b1_ref: (hidden, 1)
    w2T_ref: (dim_h, hidden)   b2_ref: (dim_h, 1)
    oT_ref : (dim_h, tm)    column tile of out^T (lane-dense stores)
    """
    xT = xT_ref[...]
    # Linear 1 (transposed): h^T = W1^T @ x^T  -> (hidden, tm), f32 accumulate.
    h = jnp.dot(w1T_ref[...], xT, preferred_element_type=jnp.float32) + b1_ref[...]
    # Exact erf-based GELU (matches torch.nn.GELU() default).
    inv_sqrt2 = jnp.float32(0.7071067811865476)
    h = 0.5 * h * (1.0 + lax.erf(h * inv_sqrt2))
    # Down-cast for the second MXU pass only for sub-f32 inputs (e.g. bf16).
    if xT_ref.dtype != jnp.float32:
        h = h.astype(xT_ref.dtype)
    # Linear 2 (transposed): out^T = W2^T @ h^T -> (dim_h, tm).
    out = jnp.dot(w2T_ref[...], h, preferred_element_type=jnp.float32) + b2_ref[...]
    oT_ref[...] = out.astype(oT_ref.dtype)


def predictor_forward(x, w1, b1, w2, b2, *, tm=512):
    """BYOL Predictor forward: Linear(dim_h->hidden) -> GELU -> Linear(hidden->dim_h).

    x: (B, dim_h) -> (B, dim_h).  Fused in a single Pallas kernel, tiled over batch.
    """
    B, dim_h = x.shape
    hidden = w1.shape[1]

    # Lane-dense batch tile (multiple of 128); pad batch up to a tile multiple.
    b_padded = _round_up(B, 128)
    tm = _round_up(max(1, min(tm, b_padded)), 128)
    b_padded = _round_up(b_padded, tm)
    grid = (b_padded // tm,)

    # Layout plumbing in the wrapper: transpose so batch maps to lanes.
    x_p = x if b_padded == B else jnp.pad(x, ((0, b_padded - B), (0, 0)))
    xT = x_p.T                       # (dim_h, b_padded)
    w1T = w1.T                       # (hidden, dim_h)
    w2T = w2.T                       # (dim_h, hidden)
    b1c = b1.reshape(hidden, 1)
    b2c = b2.reshape(dim_h, 1)

    oT = pl.pallas_call(
        _predictor_kernel,
        out_shape=jax.ShapeDtypeStruct((dim_h, b_padded), x.dtype),
        grid_spec=pltpu.PrefetchScalarGridSpec(
            num_scalar_prefetch=0,
            grid=grid,
            in_specs=[
                pl.BlockSpec((dim_h, tm), lambda i: (0, i)),       # x^T column tile
                pl.BlockSpec((hidden, dim_h), lambda i: (0, 0)),   # W1^T (resident)
                pl.BlockSpec((hidden, 1), lambda i: (0, 0)),       # b1
                pl.BlockSpec((dim_h, hidden), lambda i: (0, 0)),   # W2^T (resident)
                pl.BlockSpec((dim_h, 1), lambda i: (0, 0)),        # b2
            ],
            out_specs=pl.BlockSpec((dim_h, tm), lambda i: (0, i)),
        ),
        compiler_params=pltpu.CompilerParams(
            dimension_semantics=("parallel",)),
    )(xT, w1T, b1c, w2T, b2c)

    out = oT.T
    return out if b_padded == B else out[:B]


def _init_linear(key, fan_in, fan_out, dtype=jnp.float32):
    # Deterministic init matching PyTorch nn.Linear default: U(-1/sqrt(fan_in), +)
    kw, kb = jax.random.split(key)
    bound = 1.0 / (fan_in ** 0.5)
    w = jax.random.uniform(kw, (fan_in, fan_out), dtype, minval=-bound, maxval=bound)
    b = jax.random.uniform(kb, (fan_out,), dtype, minval=-bound, maxval=bound)
    return w, b


def _reference(x, w1, b1, w2, b2):
    h = x @ w1 + b1
    h = 0.5 * h * (1.0 + lax.erf(h * 0.7071067811865476))
    return h @ w2 + b2


if __name__ == "__main__":
    # config: dim_h=32, mlp_ratio=4.0, drop_rate=0.0 (eval)
    dim_h = 32
    mlp_ratio = 4.0
    hidden = int(dim_h * mlp_ratio)   # 128
    batch = 8

    key = jax.random.PRNGKey(0)
    kx, k1, k2, kx2 = jax.random.split(key, 4)

    x = jax.random.normal(kx, (batch, dim_h), jnp.float32)
    w1, b1 = _init_linear(k1, dim_h, hidden)
    w2, b2 = _init_linear(k2, hidden, dim_h)

    # Small-batch run (pads 8 -> 128, single grid step).
    y = jax.block_until_ready(predictor_forward(x, w1, b1, w2, b2))
    y_ref = _reference(x, w1, b1, w2, b2)
    assert jnp.allclose(y, y_ref, atol=1e-4, rtol=1e-4), "mismatch vs reference (small)"

    # Non-multiple batch exercising padding + multi-step grid (300 -> 384, 3 steps).
    x2 = jax.random.normal(kx2, (300, dim_h), jnp.float32)
    y2 = jax.block_until_ready(predictor_forward(x2, w1, b1, w2, b2, tm=128))
    y2_ref = _reference(x2, w1, b1, w2, b2)
    assert jnp.allclose(y2, y2_ref, atol=1e-4, rtol=1e-4), "mismatch vs reference (padded)"

    print("KERNEL_OK")
</pallas_src>

<mosaic_0001>
module attributes {stable_mosaic.version = 11 : i64} {
  func.func @_predictor_kernel(%arg0: i32, %arg1: memref<32x128xf32, #tpu.memory_space<vmem>>, %arg2: memref<128x32xf32, #tpu.memory_space<vmem>>, %arg3: memref<128x1xf32, #tpu.memory_space<vmem>>, %arg4: memref<32x128xf32, #tpu.memory_space<vmem>>, %arg5: memref<32x1xf32, #tpu.memory_space<vmem>>, %arg6: memref<32x128xf32, #tpu.memory_space<vmem>>) attributes {dimension_semantics = [#tpu.dimension_semantics<parallel>], iteration_bounds = array<i64: 1>, scalar_prefetch = 0 : i64, scratch_operands = 0 : i64, tpu.core_type = #tpu.core_type<tc>, window_params = [{transform_indices = @transform_0, window_bounds = array<i64: 32, 128>}, {pipeline_mode = #tpu.pipeline_mode<synchronous>, transform_indices = @transform_1, window_bounds = array<i64: 128, 32>}, {pipeline_mode = #tpu.pipeline_mode<synchronous>, transform_indices = @transform_2, window_bounds = array<i64: 128, 1>}, {pipeline_mode = #tpu.pipeline_mode<synchronous>, transform_indices = @transform_3, window_bounds = array<i64: 32, 128>}, {pipeline_mode = #tpu.pipeline_mode<synchronous>, transform_indices = @transform_4, window_bounds = array<i64: 32, 1>}, {transform_indices = @transform_5, window_bounds = array<i64: 32, 128>}]} {
    %c0 = arith.constant 0 : index
    %c0_0 = arith.constant 0 : index
    %0 = vector.load %arg1[%c0, %c0_0] : memref<32x128xf32, #tpu.memory_space<vmem>>, vector<32x128xf32>
    %c0_1 = arith.constant 0 : index
    %c0_2 = arith.constant 0 : index
    %1 = vector.load %arg2[%c0_1, %c0_2] : memref<128x32xf32, #tpu.memory_space<vmem>>, vector<128x32xf32>
    %cst = arith.constant dense<0.000000e+00> : vector<128x128xf32>
    %2 = tpu.matmul %1, %0, %cst {dimension_numbers = #tpu.dot_dimension_numbers<[1], [0], [0], [1], [0, 0, 1, 1], [], []>} : vector<128x32xf32>, vector<32x128xf32>, vector<128x128xf32> -> vector<128x128xf32>
    %c0_3 = arith.constant 0 : index
    %c0_4 = arith.constant 0 : index
    %3 = vector.load %arg3[%c0_3, %c0_4] : memref<128x1xf32, #tpu.memory_space<vmem>>, vector<128x1xf32>
    %4 = vector.broadcast %3 : vector<128x1xf32> to vector<128x128xf32>
    %5 = arith.addf %2, %4 : vector<128x128xf32>
    %cst_5 = arith.constant 5.000000e-01 : f32
    %6 = vector.broadcast %cst_5 : f32 to vector<128x128xf32>
    %7 = arith.mulf %6, %5 : vector<128x128xf32>
    %cst_6 = arith.constant 0.707106769 : f32
    %8 = vector.broadcast %cst_6 : f32 to vector<128x128xf32>
    %9 = arith.mulf %5, %8 : vector<128x128xf32>
    %10 = math.erf %9 : vector<128x128xf32>
    %cst_7 = arith.constant 1.000000e+00 : f32
    %11 = vector.broadcast %cst_7 : f32 to vector<128x128xf32>
    %12 = arith.addf %11, %10 : vector<128x128xf32>
    %13 = arith.mulf %7, %12 : vector<128x128xf32>
    %c0_8 = arith.constant 0 : index
    %c0_9 = arith.constant 0 : index
    %14 = vector.load %arg4[%c0_8, %c0_9] : memref<32x128xf32, #tpu.memory_space<vmem>>, vector<32x128xf32>
    %cst_10 = arith.constant dense<0.000000e+00> : vector<32x128xf32>
    %15 = tpu.matmul %14, %13, %cst_10 {dimension_numbers = #tpu.dot_dimension_numbers<[1], [0], [0], [1], [0, 0, 1, 1], [], []>} : vector<32x128xf32>, vector<128x128xf32>, vector<32x128xf32> -> vector<32x128xf32>
    %c0_11 = arith.constant 0 : index
    %c0_12 = arith.constant 0 : index
    %16 = vector.load %arg5[%c0_11, %c0_12] : memref<32x1xf32, #tpu.memory_space<vmem>>, vector<32x1xf32>
    %17 = vector.broadcast %16 : vector<32x1xf32> to vector<32x128xf32>
    %18 = arith.addf %15, %17 : vector<32x128xf32>
    %c0_13 = arith.constant 0 : index
    %c0_14 = arith.constant 0 : index
    %19 = vector.load %arg6[%c0_13, %c0_14] : memref<32x128xf32, #tpu.memory_space<vmem>>, vector<32x128xf32>
    tpu.vector_store %arg6[%c0_13, %c0_14], %18 {strides = array<i32>} : memref<32x128xf32, #tpu.memory_space<vmem>>, vector<32x128xf32>,
    return
  }
  func.func @transform_0(%arg0: i32) -> (i32, i32) {
    %c0_i32 = arith.constant 0 : i32
    %c0_i32_0 = arith.constant 0 : i32
    return %c0_i32, %arg0 : i32, i32
  }
  func.func @transform_1(%arg0: i32) -> (i32, i32) {
    %c0_i32 = arith.constant 0 : i32
    %c0_i32_0 = arith.constant 0 : i32
    %c0_i32_1 = arith.constant 0 : i32
    return %c0_i32, %c0_i32_0 : i32, i32
  }
  func.func @transform_2(%arg0: i32) -> (i32, i32) {
    %c0_i32 = arith.constant 0 : i32
    %c0_i32_0 = arith.constant 0 : i32
    %c0_i32_1 = arith.constant 0 : i32
    return %c0_i32, %c0_i32_0 : i32, i32
  }
  func.func @transform_3(%arg0: i32) -> (i32, i32) {
    %c0_i32 = arith.constant 0 : i32
    %c0_i32_0 = arith.constant 0 : i32
    %c0_i32_1 = arith.constant 0 : i32
    return %c0_i32, %c0_i32_0 : i32, i32
  }
  func.func @transform_4(%arg0: i32) -> (i32, i32) {
    %c0_i32 = arith.constant 0 : i32
    %c0_i32_0 = arith.constant 0 : i32
    %c0_i32_1 = arith.constant 0 : i32
    return %c0_i32, %c0_i32_0 : i32, i32
  }
  func.func @transform_5(%arg0: i32) -> (i32, i32) {
    %c0_i32 = arith.constant 0 : i32
    %c0_i32_0 = arith.constant 0 : i32
    return %c0_i32, %arg0 : i32, i32
  }
}

</mosaic_0001>

<llo_original>
// kernel: tpu_custom_call.1
$region0: #{tpu_custom_call.1}
  #allocation0 [shape = 'u32[]', space=smem, size = 0x4, offset = 0x4, fixed_abs, tag = 'smem constant byte address 0x4 - core index']
  #allocation1 [shape = 'u32[144,128]{1,0:T(1,128)}', space=vmem, size = 0x12000, scoped, tag = 'internal scratch']
  %s0 = inlined_call_operand.vmem [shape: f32[32,128], index: 0, kind: input, shape index: {}]
  %s1 = inlined_call_operand.vmem [shape: f32[128,32], index: 1, kind: input, shape index: {}]
  %s2 = inlined_call_operand.vmem [shape: f32[128,1], index: 2, kind: input, shape index: {}]
  %s3 = inlined_call_operand.vmem [shape: f32[32,128], index: 3, kind: input, shape index: {}]
  %s4 = inlined_call_operand.vmem [shape: f32[32,1], index: 4, kind: input, shape index: {}]
  %s5 = inlined_call_operand.hbm [shape: f32[32,128], index: 5, kind: output, shape index: {}]
  %s6 = sld [smem:[#allocation0]]
  $region30: #{tpu_custom_call.1} parent=0
    _
  %s8 = ssub.s32 1, %s6
  %s9 = scalar_select 0, %s8, %s6
  $region1: #{tpu_custom_call.1} parent=0
    #allocation2 [shape = 'u8[16384]{0}', space=vmem, size = 0x4000, scoped, tag = 'output window, operand 0, single buffered']
    #allocation3 [shape = 's32[1]{0}', space=sflag, size = 0x4, scoped, tag = 'scoped memory for tpu_custom_call.1']
    %10 = vsyncpa [#allocation3], 0
    // Predicated region
    $region2: #{tpu_custom_call.1} parent=1 // pred_check
      _
    $region3: #{tpu_custom_call.1} parent=1 // pred_check_branch
      %12 = sbr.rel (0) target = $region5
    $region4: #{tpu_custom_call.1} parent=1 // pred_region
      _
    $region5: #{tpu_custom_call.1} parent=1 // pred_fallthru
      _
    // Predicated region
    $region6: #{tpu_custom_call.1} parent=1 // pred_check
      _
    $region7: #{tpu_custom_call.1} parent=1 // pred_check_branch
      %14 = sbr.rel (0) target = $region9
    $region8: #{tpu_custom_call.1} parent=1 // pred_region
      _
    $region9: #{tpu_custom_call.1} parent=1 // pred_fallthru
      _
    // Predicated region
    $region10: #{tpu_custom_call.1} parent=1 // pred_check
      _
    $region11: #{tpu_custom_call.1} parent=1 // pred_check_branch
      %16 = sbr.rel (0) target = $region13
    $region12: #{tpu_custom_call.1} parent=1 // pred_region
      _
    $region13: #{tpu_custom_call.1} parent=1 // pred_fallthru
      _
    // Predicated region
    $region14: #{tpu_custom_call.1} parent=1 // pred_check
      _
    $region15: #{tpu_custom_call.1} parent=1 // pred_check_branch
      %18 = sbr.rel (0) target = $region17
    $region16: #{tpu_custom_call.1} parent=1 // pred_region
      _
    $region17: #{tpu_custom_call.1} parent=1 // pred_fallthru
      _
    // Predicated region
    $region18: #{tpu_custom_call.1} parent=1 // pred_check
      _
    $region19: #{tpu_custom_call.1} parent=1 // pred_check_branch
      %20 = sbr.rel (0) target = $region21
    $region20: #{tpu_custom_call.1} parent=1 // pred_region
      _
    $region21: #{tpu_custom_call.1} parent=1 // pred_fallthru
      _
    %v21 = vld [vmem:[%s0] sm:$0xff]
    %v22 = vld [vmem:[%s0 + $0x8] sm:$0xff]
    %v23 = vld [vmem:[%s0 + $0x10] sm:$0xff]
    %v24 = vld [vmem:[%s0 + $0x18] sm:$0xff]
    %v25 = vld [vmem:[%s1] sm:$0xff]
    %v26 = vld [vmem:[%s1 + $0x8] sm:$0xff]
    %v27 = vld [vmem:[%s1 + $0x10] sm:$0xff]
    %v28 = vld [vmem:[%s1 + $0x18] sm:$0xff]
    %v29 = vld [vmem:[%s1 + $0x20] sm:$0xff]
    %v30 = vld [vmem:[%s1 + $0x28] sm:$0xff]
    %v31 = vld [vmem:[%s1 + $0x30] sm:$0xff]
    %v32 = vld [vmem:[%s1 + $0x38] sm:$0xff]
    %v33 = vld [vmem:[%s1 + $0x40] sm:$0xff]
    %v34 = vld [vmem:[%s1 + $0x48] sm:$0xff]
    %v35 = vld [vmem:[%s1 + $0x50] sm:$0xff]
    %v36 = vld [vmem:[%s1 + $0x58] sm:$0xff]
    %v37 = vld [vmem:[%s1 + $0x60] sm:$0xff]
    %v38 = vld [vmem:[%s1 + $0x68] sm:$0xff]
    %v39 = vld [vmem:[%s1 + $0x70] sm:$0xff]
    %v40 = vld [vmem:[%s1 + $0x78] sm:$0xff]
    %v41 = vld [vmem:[%s2] sm:$0xff]
    %v42 = vld [vmem:[%s2 + $0x8] sm:$0xff]
    %v43 = vld [vmem:[%s2 + $0x10] sm:$0xff]
    %v44 = vld [vmem:[%s2 + $0x18] sm:$0xff]
    %v45 = vld [vmem:[%s2 + $0x20] sm:$0xff]
    %v46 = vld [vmem:[%s2 + $0x28] sm:$0xff]
    %v47 = vld [vmem:[%s2 + $0x30] sm:$0xff]
    %v48 = vld [vmem:[%s2 + $0x38] sm:$0xff]
    %v49 = vld [vmem:[%s2 + $0x40] sm:$0xff]
    %v50 = vld [vmem:[%s2 + $0x48] sm:$0xff]
    %v51 = vld [vmem:[%s2 + $0x50] sm:$0xff]
    %v52 = vld [vmem:[%s2 + $0x58] sm:$0xff]
    %v53 = vld [vmem:[%s2 + $0x60] sm:$0xff]
    %v54 = vld [vmem:[%s2 + $0x68] sm:$0xff]
    %v55 = vld [vmem:[%s2 + $0x70] sm:$0xff]
    %v56 = vld [vmem:[%s2 + $0x78] sm:$0xff]
    %58 = vset.pattern.permute.xlu0 0
    %59 = vperm.xlu0 %58, %v41
    %v60 = vpop.permute.xlu0 %59
    %63 = vset.pattern.permute.xlu0 0
    %64 = vperm.xlu0 %63, %v42
    %v65 = vpop.permute.xlu0 %64
    %68 = vset.pattern.permute.xlu0 0
    %69 = vperm.xlu0 %68, %v43
    %v70 = vpop.permute.xlu0 %69
    %73 = vset.pattern.permute.xlu0 0
    %74 = vperm.xlu0 %73, %v44
    %v75 = vpop.permute.xlu0 %74
    %78 = vset.pattern.permute.xlu0 0
    %79 = vperm.xlu0 %78, %v45
    %v80 = vpop.permute.xlu0 %79
    %83 = vset.pattern.permute.xlu0 0
    %84 = vperm.xlu0 %83, %v46
    %v85 = vpop.permute.xlu0 %84
    %88 = vset.pattern.permute.xlu0 0
    %89 = vperm.xlu0 %88, %v47
    %v90 = vpop.permute.xlu0 %89
    %93 = vset.pattern.permute.xlu0 0
    %94 = vperm.xlu0 %93, %v48
    %v95 = vpop.permute.xlu0 %94
    %98 = vset.pattern.permute.xlu0 0
    %99 = vperm.xlu0 %98, %v49
    %v100 = vpop.permute.xlu0 %99
    %103 = vset.pattern.permute.xlu0 0
    %104 = vperm.xlu0 %103, %v50
    %v105 = vpop.permute.xlu0 %104
    %108 = vset.pattern.permute.xlu0 0
    %109 = vperm.xlu0 %108, %v51
    %v110 = vpop.permute.xlu0 %109
    %113 = vset.pattern.permute.xlu0 0
    %114 = vperm.xlu0 %113, %v52
    %v115 = vpop.permute.xlu0 %114
    %118 = vset.pattern.permute.xlu0 0
    %119 = vperm.xlu0 %118, %v53
    %v120 = vpop.permute.xlu0 %119
    %123 = vset.pattern.permute.xlu0 0
    %124 = vperm.xlu0 %123, %v54
    %v125 = vpop.permute.xlu0 %124
    %128 = vset.pattern.permute.xlu0 0
    %129 = vperm.xlu0 %128, %v55
    %v130 = vpop.permute.xlu0 %129
    %133 = vset.pattern.permute.xlu0 0
    %134 = vperm.xlu0 %133, %v56
    %v135 = vpop.permute.xlu0 %134
    %vm137 = vcmask 261120
    %v139 = vsel %vm137, %v25, 0
    %v142 = vsel %vm137, %v26, 0
    %v145 = vsel %vm137, %v27, 0
    %v148 = vsel %vm137, %v28, 0
    %v151 = vsel %vm137, %v29, 0
    %v154 = vsel %vm137, %v30, 0
    %v157 = vsel %vm137, %v31, 0
    %v160 = vsel %vm137, %v32, 0
    %v163 = vsel %vm137, %v33, 0
    %v166 = vsel %vm137, %v34, 0
    %v169 = vsel %vm137, %v35, 0
    %v172 = vsel %vm137, %v36, 0
    %v175 = vsel %vm137, %v37, 0
    %v178 = vsel %vm137, %v38, 0
    %v181 = vsel %vm137, %v39, 0
    %v184 = vsel %vm137, %v40, 0
    %186 = vmatprep.subr.mxu0 0.0
    %187 = vmatpush1.msra.mxu0 0.0
    %188 = vmatprep.subr.mxu0 0.0
    %189 = vmatpush1.msra.mxu0 0.0
    %190 = vmatprep.subr.mxu0 0.0
    %191 = vmatpush1.msra.mxu0 0.0
    %192 = vmatprep.subr.mxu0 0.0
    %193 = vmatpush1.msra.mxu0 0.0
    %194 = vmatprep.subr.mxu0 0.0
    %195 = vmatpush1.msra.mxu0 0.0
    %196 = vmatprep.subr.mxu0 0.0
    %197 = vmatpush1.msra.mxu0 0.0
    %198 = vmatprep.subr.mxu0 0.0
    %199 = vmatpush1.msra.mxu0 0.0
    %200 = vmatprep.subr.mxu0 0.0
    %201 = vmatpush1.msra.mxu0 0.0
    %202 = vmatprep.subr.mxu0 0.0
    %203 = vmatpush1.msra.mxu0 0.0
    %204 = vmatprep.subr.mxu0 0.0
    %205 = vmatpush1.msra.mxu0 0.0
    %206 = vmatprep.subr.mxu0 0.0
    %207 = vmatpush1.msra.mxu0 0.0
    %208 = vmatprep.subr.mxu0 0.0
    %209 = vmatpush1.msra.mxu0 0.0
    %210 = vmatprep.subr.mxu0 0.0
    %211 = vmatpush1.msra.mxu0 %v24
    %212 = vmatprep.subr.mxu0 0.0
    %213 = vmatpush1.msra.mxu0 %v23
    %214 = vmatprep.subr.mxu0 0.0
    %215 = vmatpush1.msra.mxu0 %v22
    %216 = vmatprep.subr.mxu0 0.0
    %217 = vmatpush1.msra.mxu0 %v21
    %218 = vmatprep.subr.mxu0 0.0
    %219 = vmatpush2.msra.mxu0 0.0
    %220 = vmatprep.subr.mxu0 0.0
    %221 = vmatpush2.msra.mxu0 0.0
    %222 = vmatprep.subr.mxu0 0.0
    %223 = vmatpush2.msra.mxu0 0.0
    %224 = vmatprep.subr.mxu0 0.0
    %225 = vmatpush2.msra.mxu0 0.0
    %226 = vmatprep.subr.mxu0 0.0
    %227 = vmatpush2.msra.mxu0 0.0
    %228 = vmatprep.subr.mxu0 0.0
    %229 = vmatpush2.msra.mxu0 0.0
    %230 = vmatprep.subr.mxu0 0.0
    %231 = vmatpush2.msra.mxu0 0.0
    %232 = vmatprep.subr.mxu0 0.0
    %233 = vmatpush2.msra.mxu0 0.0
    %234 = vmatprep.subr.mxu0 0.0
    %235 = vmatpush2.msra.mxu0 0.0
    %236 = vmatprep.subr.mxu0 0.0
    %237 = vmatpush2.msra.mxu0 0.0
    %238 = vmatprep.subr.mxu0 0.0
    %239 = vmatpush2.msra.mxu0 0.0
    %240 = vmatprep.subr.mxu0 0.0
    %241 = vmatpush2.msra.mxu0 0.0
    %242 = vmatprep.subr.mxu0 0.0
    %243 = vmatpush2.msra.mxu0 0.0
    %244 = vmatprep.subr.mxu0 0.0
    %245 = vmatpush2.msra.mxu0 0.0
    %246 = vmatprep.subr.mxu0 0.0
    %247 = vmatpush2.msra.mxu0 0.0
    %248 = vmatprep.subr.mxu0 0.0
    %249 = vmatpush2.msra.mxu0 0.0
    %250 = vmatprep.mubr.f32.mxu0 0.0
    %251 = vmatmul.mubr.f32.gmra.mxu0 %v139
    %v252 = vpop.f32.mrf.mxu0
    %v253 = vadd.f32 %v60, %v252
    %v254 = vpop.f32.mrf.mxu0
    %255 = vmatprep.mubr.f32.mxu0 0.0
    %256 = vmatmul.mubr.f32.gmra.mxu0 %v142
    %v257 = vpop.f32.mrf.mxu0
    %v258 = vadd.f32 %v65, %v257
    %v259 = vpop.f32.mrf.mxu0
    %260 = vmatprep.mubr.f32.mxu0 0.0
    %261 = vmatmul.mubr.f32.gmra.mxu0 %v145
    %v262 = vpop.f32.mrf.mxu0
    %v263 = vadd.f32 %v70, %v262
    %v264 = vpop.f32.mrf.mxu0
    %265 = vmatprep.mubr.f32.mxu0 0.0
    %266 = vmatmul.mubr.f32.gmra.mxu0 %v148
    %v267 = vpop.f32.mrf.mxu0
    %v268 = vadd.f32 %v75, %v267
    %v269 = vpop.f32.mrf.mxu0
    %270 = vmatprep.mubr.f32.mxu0 0.0
    %271 = vmatmul.mubr.f32.gmra.mxu0 %v151
    %v272 = vpop.f32.mrf.mxu0
    %v273 = vadd.f32 %v80, %v272
    %v274 = vpop.f32.mrf.mxu0
    %275 = vmatprep.mubr.f32.mxu0 0.0
    %276 = vmatmul.mubr.f32.gmra.mxu0 %v154
    %v277 = vpop.f32.mrf.mxu0
    %v278 = vadd.f32 %v85, %v277
    %v279 = vpop.f32.mrf.mxu0
    %280 = vmatprep.mubr.f32.mxu0 0.0
    %281 = vmatmul.mubr.f32.gmra.mxu0 %v157
    %v282 = vpop.f32.mrf.mxu0
    %v283 = vadd.f32 %v90, %v282
    %v284 = vpop.f32.mrf.mxu0
    %285 = vmatprep.mubr.f32.mxu0 0.0
    %286 = vmatmul.mubr.f32.gmra.mxu0 %v160
    %v287 = vpop.f32.mrf.mxu0
    %v288 = vadd.f32 %v95, %v287
    %v289 = vpop.f32.mrf.mxu0
    %290 = vmatprep.mubr.f32.mxu0 0.0
    %291 = vmatmul.mubr.f32.gmra.mxu0 %v163
    %v292 = vpop.f32.mrf.mxu0
    %v293 = vadd.f32 %v100, %v292
    %v294 = vpop.f32.mrf.mxu0
    %295 = vmatprep.mubr.f32.mxu0 0.0
    %296 = vmatmul.mubr.f32.gmra.mxu0 %v166
    %v297 = vpop.f32.mrf.mxu0
    %v298 = vadd.f32 %v105, %v297
    %v299 = vpop.f32.mrf.mxu0
    %300 = vmatprep.mubr.f32.mxu0 0.0
    %301 = vmatmul.mubr.f32.gmra.mxu0 %v169
    %v302 = vpop.f32.mrf.mxu0
    %v303 = vadd.f32 %v110, %v302
    %v304 = vpop.f32.mrf.mxu0
    %305 = vmatprep.mubr.f32.mxu0 0.0
    %306 = vmatmul.mubr.f32.gmra.mxu0 %v172
    %v307 = vpop.f32.mrf.mxu0
    %v308 = vadd.f32 %v115, %v307
    %v309 = vpop.f32.mrf.mxu0
    %310 = vmatprep.mubr.f32.mxu0 0.0
    %311 = vmatmul.mubr.f32.gmra.mxu0 %v175
    %v312 = vpop.f32.mrf.mxu0
    %v313 = vadd.f32 %v120, %v312
    %v314 = vpop.f32.mrf.mxu0
    %315 = vmatprep.mubr.f32.mxu0 0.0
    %316 = vmatmul.mubr.f32.gmra.mxu0 %v178
    %v317 = vpop.f32.mrf.mxu0
    %v318 = vadd.f32 %v125, %v317
    %v319 = vpop.f32.mrf.mxu0
    %320 = vmatprep.mubr.f32.mxu0 0.0
    %321 = vmatmul.mubr.f32.gmra.mxu0 %v181
    %v322 = vpop.f32.mrf.mxu0
    %v323 = vadd.f32 %v130, %v322
    %v324 = vpop.f32.mrf.mxu0
    %325 = vmatprep.mubr.f32.mxu0 0.0
    %326 = vmatmul.mubr.f32.gmra.mxu0 %v184
    %v327 = vpop.f32.mrf.mxu0
    %v328 = vadd.f32 %v135, %v327
    %v329 = vpop.f32.mrf.mxu0
    %330 = vdwg.mxu0
    %v331 = vmul.f32 %v253, 0.5
    %v332 = vmul.f32 %v258, 0.5
    %v333 = vmul.f32 %v263, 0.5
    %v334 = vmul.f32 %v268, 0.5
    %v335 = vmul.f32 %v273, 0.5
    %v336 = vmul.f32 %v278, 0.5
    %v337 = vmul.f32 %v283, 0.5
    %v338 = vmul.f32 %v288, 0.5
    %v339 = vmul.f32 %v293, 0.5
    %v340 = vmul.f32 %v298, 0.5
    %v341 = vmul.f32 %v303, 0.5
    %v342 = vmul.f32 %v308, 0.5
    %v343 = vmul.f32 %v313, 0.5
    %v344 = vmul.f32 %v318, 0.5
    %v345 = vmul.f32 %v323, 0.5
    %v346 = vmul.f32 %v328, 0.5
    %v347 = vmul.f32 %v253, 0.70710677
    %v348 = vmul.f32 %v258, 0.70710677
    %v349 = vmul.f32 %v263, 0.70710677
    %v350 = vmul.f32 %v268, 0.70710677
    %v351 = vmul.f32 %v273, 0.70710677
    %v352 = vmul.f32 %v278, 0.70710677
    %v353 = vmul.f32 %v283, 0.70710677
    %v354 = vmul.f32 %v288, 0.70710677
    %v355 = vmul.f32 %v293, 0.70710677
    %v356 = vmul.f32 %v298, 0.70710677
    %v357 = vmul.f32 %v303, 0.70710677
    %v358 = vmul.f32 %v308, 0.70710677
    %v359 = vmul.f32 %v313, 0.70710677
    %v360 = vmul.f32 %v318, 0.70710677
    %v361 = vmul.f32 %v323, 0.70710677
    %v362 = vmul.f32 %v328, 0.70710677
    %v363 = verf.f32.pop %v347
    %v364 = verf.f32.pop %v348
    %v365 = verf.f32.pop %v349
    %v366 = verf.f32.pop %v350
    %v367 = verf.f32.pop %v351
    %v368 = verf.f32.pop %v352
    %v369 = verf.f32.pop %v353
    %v370 = verf.f32.pop %v354
    %v371 = verf.f32.pop %v355
    %v372 = verf.f32.pop %v356
    %v373 = verf.f32.pop %v357
    %v374 = verf.f32.pop %v358
    %v375 = verf.f32.pop %v359
    %v376 = verf.f32.pop %v360
    %v377 = verf.f32.pop %v361
    %v378 = verf.f32.pop %v362
    %v379 = vadd.f32 %v363, 1.0
    %v380 = vadd.f32 %v364, 1.0
    %v381 = vadd.f32 %v365, 1.0
    %v382 = vadd.f32 %v366, 1.0
    %v383 = vadd.f32 %v367, 1.0
    %v384 = vadd.f32 %v368, 1.0
    %v385 = vadd.f32 %v369, 1.0
    %v386 = vadd.f32 %v370, 1.0
    %v387 = vadd.f32 %v371, 1.0
    %v388 = vadd.f32 %v372, 1.0
    %v389 = vadd.f32 %v373, 1.0
    %v390 = vadd.f32 %v374, 1.0
    %v391 = vadd.f32 %v375, 1.0
    %v392 = vadd.f32 %v376, 1.0
    %v393 = vadd.f32 %v377, 1.0
    %v394 = vadd.f32 %v378, 1.0
    %v395 = vmul.f32 %v331, %v379
    %v396 = vmul.f32 %v332, %v380
    %v397 = vmul.f32 %v333, %v381
    %v398 = vmul.f32 %v334, %v382
    %v399 = vmul.f32 %v335, %v383
    %v400 = vmul.f32 %v336, %v384
    %v401 = vmul.f32 %v337, %v385
    %v402 = vmul.f32 %v338, %v386
    %v403 = vmul.f32 %v339, %v387
    %v404 = vmul.f32 %v340, %v388
    %v405 = vmul.f32 %v341, %v389
    %v406 = vmul.f32 %v342, %v390
    %v407 = vmul.f32 %v343, %v391
    %v408 = vmul.f32 %v344, %v392
    %v409 = vmul.f32 %v345, %v393
    %v410 = vmul.f32 %v346, %v394
    %v411 = vld [vmem:[%s3] sm:$0xff]
    %v412 = vld [vmem:[%s3 + $0x8] sm:$0xff]
    %v413 = vld [vmem:[%s3 + $0x10] sm:$0xff]
    %v414 = vld [vmem:[%s3 + $0x18] sm:$0xff]
    %v415 = vld [vmem:[%s4] sm:$0xff]
    %v416 = vld [vmem:[%s4 + $0x8] sm:$0xff]
    %v417 = vld [vmem:[%s4 + $0x10] sm:$0xff]
    %v418 = vld [vmem:[%s4 + $0x18] sm:$0xff]
    %420 = vset.pattern.permute.xlu0 0
    %421 = vperm.xlu0 %420, %v415
    %v422 = vpop.permute.xlu0 %421
    %425 = vset.pattern.permute.xlu0 0
    %426 = vperm.xlu0 %425, %v416
    %v427 = vpop.permute.xlu0 %426
    %430 = vset.pattern.permute.xlu0 0
    %431 = vperm.xlu0 %430, %v417
    %v432 = vpop.permute.xlu0 %431
    %435 = vset.pattern.permute.xlu0 0
    %436 = vperm.xlu0 %435, %v418
    %v437 = vpop.permute.xlu0 %436
    %439 = vmatprep.subr.mxu0 0.0
    %440 = vmatpush1.msra.mxu0 %v410
    %441 = vmatprep.subr.mxu0 0.0
    %442 = vmatpush1.msra.mxu0 %v409
    %443 = vmatprep.subr.mxu0 0.0
    %444 = vmatpush1.msra.mxu0 %v408
    %445 = vmatprep.subr.mxu0 0.0
    %446 = vmatpush1.msra.mxu0 %v407
    %447 = vmatprep.subr.mxu0 0.0
    %448 = vmatpush1.msra.mxu0 %v406
    %449 = vmatprep.subr.mxu0 0.0
    %450 = vmatpush1.msra.mxu0 %v405
    %451 = vmatprep.subr.mxu0 0.0
    %452 = vmatpush1.msra.mxu0 %v404
    %453 = vmatprep.subr.mxu0 0.0
    %454 = vmatpush1.msra.mxu0 %v403
    %455 = vmatprep.subr.mxu0 0.0
    %456 = vmatpush1.msra.mxu0 %v402
    %457 = vmatprep.subr.mxu0 0.0
    %458 = vmatpush1.msra.mxu0 %v401
    %459 = vmatprep.subr.mxu0 0.0
    %460 = vmatpush1.msra.mxu0 %v400
    %461 = vmatprep.subr.mxu0 0.0
    %462 = vmatpush1.msra.mxu0 %v399
    %463 = vmatprep.subr.mxu0 0.0
    %464 = vmatpush1.msra.mxu0 %v398
    %465 = vmatprep.subr.mxu0 0.0
    %466 = vmatpush1.msra.mxu0 %v397
    %467 = vmatprep.subr.mxu0 0.0
    %468 = vmatpush1.msra.mxu0 %v396
    %469 = vmatprep.subr.mxu0 0.0
    %470 = vmatpush1.msra.mxu0 %v395
    %471 = vmatprep.subr.mxu0 0.0
    %472 = vmatpush2.msra.mxu0 0.0
    %473 = vmatprep.subr.mxu0 0.0
    %474 = vmatpush2.msra.mxu0 0.0
    %475 = vmatprep.subr.mxu0 0.0
    %476 = vmatpush2.msra.mxu0 0.0
    %477 = vmatprep.subr.mxu0 0.0
    %478 = vmatpush2.msra.mxu0 0.0
    %479 = vmatprep.subr.mxu0 0.0
    %480 = vmatpush2.msra.mxu0 0.0
    %481 = vmatprep.subr.mxu0 0.0
    %482 = vmatpush2.msra.mxu0 0.0
    %483 = vmatprep.subr.mxu0 0.0
    %484 = vmatpush2.msra.mxu0 0.0
    %485 = vmatprep.subr.mxu0 0.0
    %486 = vmatpush2.msra.mxu0 0.0
    %487 = vmatprep.subr.mxu0 0.0
    %488 = vmatpush2.msra.mxu0 0.0
    %489 = vmatprep.subr.mxu0 0.0
    %490 = vmatpush2.msra.mxu0 0.0
    %491 = vmatprep.subr.mxu0 0.0
    %492 = vmatpush2.msra.mxu0 0.0
    %493 = vmatprep.subr.mxu0 0.0
    %494 = vmatpush2.msra.mxu0 0.0
    %495 = vmatprep.subr.mxu0 0.0
    %496 = vmatpush2.msra.mxu0 0.0
    %497 = vmatprep.subr.mxu0 0.0
    %498 = vmatpush2.msra.mxu0 0.0
    %499 = vmatprep.subr.mxu0 0.0
    %500 = vmatpush2.msra.mxu0 0.0
    %501 = vmatprep.subr.mxu0 0.0
    %502 = vmatpush2.msra.mxu0 0.0
    %503 = vmatprep.mubr.f32.mxu0 0.0
    %504 = vmatmul.mubr.f32.gmra.mxu0 %v411
    %v505 = vpop.f32.mrf.mxu0
    %v506 = vadd.f32 %v422, %v505
    %v507 = vpop.f32.mrf.mxu0
    %508 = vmatprep.mubr.f32.mxu0 0.0
    %509 = vmatmul.mubr.f32.gmra.mxu0 %v412
    %v510 = vpop.f32.mrf.mxu0
    %v511 = vadd.f32 %v427, %v510
    %v512 = vpop.f32.mrf.mxu0
    %513 = vmatprep.mubr.f32.mxu0 0.0
    %514 = vmatmul.mubr.f32.gmra.mxu0 %v413
    %v515 = vpop.f32.mrf.mxu0
    %v516 = vadd.f32 %v432, %v515
    %v517 = vpop.f32.mrf.mxu0
    %518 = vmatprep.mubr.f32.mxu0 0.0
    %519 = vmatmul.mubr.f32.gmra.mxu0 %v414
    %v520 = vpop.f32.mrf.mxu0
    %v521 = vadd.f32 %v437, %v520
    %v522 = vpop.f32.mrf.mxu0
    %523 = vdwg.mxu0
    %524 = vst [vmem:[#allocation2] sm:$0xff] %v506
    %525 = vst [vmem:[#allocation2 + $0x8] sm:$0xff] %v511
    %526 = vst [vmem:[#allocation2 + $0x10] sm:$0xff] %v516
    %527 = vst [vmem:[#allocation2 + $0x18] sm:$0xff] %v521
    // Predicated region
    $region22: #{tpu_custom_call.1} parent=1 // pred_check
      _
    $region23: #{tpu_custom_call.1} parent=1 // pred_check_branch
      %529 = sbr.rel (0) target = $region25
    $region24: #{tpu_custom_call.1} parent=1 // pred_region
      %s531 = ssub.s32 512, 512
      %532 = vsyncadd [#allocation3], %s531
      %s533 = sshll.u32 [#allocation2], 4
      %s534 = int_to_ptr.vmem [resolvable:$true] %s533
      %539 = dma.vmem_to_hbm [thread:$0]  %s534, 512, %s5, [#allocation3], 128, 128, 8
    $region25: #{tpu_custom_call.1} parent=1 // pred_fallthru
      _
    // Predicated region
    $region26: #{tpu_custom_call.1} parent=1 // pred_check
      _
    $region27: #{tpu_custom_call.1} parent=1 // pred_check_branch
      %541 = sbr.rel (0) target = $region29
    $region28: #{tpu_custom_call.1} parent=1 // pred_region
      %542 = dma.done [#allocation3], 512
    $region29: #{tpu_custom_call.1} parent=1 // pred_fallthru
      _
    %543 = vsyncpa [#allocation3], 1

</llo_original>
